<compile_context>
chip_gen: v5e
topology: v5e:2x2
jax: 0.10.0
libtpu: 0.0.40
codegen_flags: <defaults>
</compile_context>

<pallas_src>
import jax
import jax.numpy as jnp
from jax.experimental import pallas as pl
from jax.experimental.pallas import tpu as pltpu

_LANE = 128


def _cdiv(a, b):
    return (a + b - 1) // b


def _round_up(n, m):
    return _cdiv(n, m) * m


def _choose_tm(B, tm_max):
    """Batch tile: large (amortize per-step cost), <=1 tile of row padding, and
    >=2 grid steps when there is enough work (v7x has 2 TensorCores)."""
    granule = 8 if B <= 16 else 16
    min_tiles = 2 if B >= 512 else 1          # only split when each tile is >= 256 rows
    n_tiles = max(min_tiles, _cdiv(B, tm_max))
    return _round_up(_cdiv(B, n_tiles), granule)


def mlp_kernel(x_ref, w1_ref, w2_ref, w3_ref, b_ref, o_ref):
    """One batch tile: o = relu(relu(relu(x@W1+b1)@W2+b2)@W3+b3).

    x_ref is read natively (f32, unpadded feature dim) and cast in-register to the
    weight dtype (no-op for f32).  Matmuls accumulate in f32; bias-add/ReLU in f32.
    """
    cdt = w1_ref.dtype
    h1w = w1_ref.shape[1]
    h2w = w2_ref.shape[1]
    cw = o_ref.shape[-1]

    # Layer 1
    h = jnp.dot(x_ref[...].astype(cdt), w1_ref[...], preferred_element_type=jnp.float32)
    h = jnp.maximum(h + b_ref[0:1, :h1w], 0.0)
    # Layer 2
    h = jnp.dot(h.astype(cdt), w2_ref[...], preferred_element_type=jnp.float32)
    h = jnp.maximum(h + b_ref[1:2, :h2w], 0.0)
    # Layer 3 (+ final ReLU, as in the PyTorch module)
    h = jnp.dot(h.astype(cdt), w3_ref[...], preferred_element_type=jnp.float32)
    h = jnp.maximum(h + b_ref[2:3, :cw], 0.0)

    o_ref[...] = h.astype(o_ref.dtype)


def my_neural_net(x, w1, b1, w2, b2, w3, b3, *, compute_dtype=jnp.float32, tm_max=4096):
    """x: (B, D) f32; w_i: (in, out); b_i: (1, out).  Returns (B, num_class) f32."""
    B, D = x.shape
    H1 = w1.shape[1]
    H2 = w2.shape[1]
    C = w3.shape[1]

    # Only the hidden dims are lane-padded to 128 (zero rows/cols are exact no-ops
    # for matmul + ReLU).  x's feature dim D and the class dim C are left unpadded:
    # both satisfy the "block dim == full array dim" rule, so x is read and the
    # output written with no extra wrapper-side pad / slice passes.
    H1p = _round_up(H1, _LANE)
    H2p = _round_up(H2, _LANE)
    Np = max(H1p, H2p)

    tm = _choose_tm(B, tm_max)
    Bp = _round_up(B, tm)
    # Row-only zero padding of x (never more than one tile); no dtype cast, no
    # feature-dim padding.
    x_in = x if Bp == B else jnp.pad(x, ((0, Bp - B), (0, 0)))

    def padw(w, rows, cols):
        return jnp.pad(w, ((0, rows - w.shape[0]), (0, cols - w.shape[1]))).astype(compute_dtype)

    w1p = padw(w1, D, H1p)
    w2p = padw(w2, H1p, H2p)
    w3p = padw(w3, H2p, C)          # output (class) dim left unpadded at C

    # Fold the three biases into a single (8, Np) f32 tile -> one tiny resident DMA.
    bias = jnp.zeros((8, Np), jnp.float32)
    bias = bias.at[0, :H1].set(b1.reshape(-1).astype(jnp.float32))
    bias = bias.at[1, :H2].set(b2.reshape(-1).astype(jnp.float32))
    bias = bias.at[2, :C].set(b3.reshape(-1).astype(jnp.float32))

    wbytes = jnp.dtype(compute_dtype).itemsize
    cost = pl.CostEstimate(
        flops=2 * Bp * (D * H1p + H1p * H2p + H2p * C),
        transcendentals=0,
        bytes_accessed=(Bp * D * 4 + Bp * C * 4
                        + (D * H1p + H1p * H2p + H2p * C) * wbytes
                        + 8 * Np * 4),
    )

    grid = (Bp // tm,)
    out = pl.pallas_call(
        mlp_kernel,
        out_shape=jax.ShapeDtypeStruct((Bp, C), jnp.float32),
        grid_spec=pltpu.PrefetchScalarGridSpec(
            num_scalar_prefetch=0,
            grid=grid,
            in_specs=[
                pl.BlockSpec((tm, D), lambda i: (i, 0)),     # x: streamed, native f32
                pl.BlockSpec((D, H1p), lambda i: (0, 0)),    # W1: VMEM-resident
                pl.BlockSpec((H1p, H2p), lambda i: (0, 0)),  # W2: VMEM-resident
                pl.BlockSpec((H2p, C), lambda i: (0, 0)),    # W3: VMEM-resident
                pl.BlockSpec((8, Np), lambda i: (0, 0)),     # stacked biases: resident
            ],
            out_specs=pl.BlockSpec((tm, C), lambda i: (i, 0)),
        ),
        compiler_params=pltpu.CompilerParams(
            # Batch tiles are independent -> shard the grid across TensorCores on v7x.
            dimension_semantics=("parallel",),
        ),
        cost_estimate=cost,
    )(x_in, w1p, w2p, w3p, bias)

    return out if Bp == B else out[:B]


def init_linear_params(key, in_dim, out_dim):
    """Deterministic init mimicking nn.Linear's uniform(-1/sqrt(in), 1/sqrt(in))."""
    kw, kb = jax.random.split(key)
    bound = 1.0 / jnp.sqrt(jnp.float32(in_dim))
    # PyTorch weight is (out, in); stored transposed as (in, out) so the kernel does x @ W.
    w = jax.random.uniform(kw, (in_dim, out_dim), jnp.float32, -bound, bound)
    b = jax.random.uniform(kb, (1, out_dim), jnp.float32, -bound, bound)
    return w, b


def ref_forward(x, w1, b1, w2, b2, w3, b3):
    relu = lambda v: jnp.maximum(v, 0.0)
    h = relu(x @ w1 + b1)
    h = relu(h @ w2 + b2)
    h = relu(h @ w3 + b3)
    return h


if __name__ == "__main__":
    # Small shapes consistent with the module: batch=8, input=32, hidden=64, classes=16.
    batch, input_size, hidden_size, num_class = 8, 32, 64, 16

    key = jax.random.PRNGKey(0)
    kx, k1, k2, k3 = jax.random.split(key, 4)

    x = jax.random.normal(kx, (batch, input_size), jnp.float32)
    w1, b1 = init_linear_params(k1, input_size, hidden_size)
    w2, b2 = init_linear_params(k2, hidden_size, hidden_size)
    w3, b3 = init_linear_params(k3, hidden_size, num_class)

    out = my_neural_net(x, w1, b1, w2, b2, w3, b3)
    out = jax.block_until_ready(out)
    assert out.shape == (batch, num_class)

    # f32 reference.  Tolerance covers MXU pass count / accumulation-order differences.
    ref = ref_forward(x, w1, b1, w2, b2, w3, b3)
    max_err = float(jnp.max(jnp.abs(out - ref)))
    assert jnp.allclose(out, ref, atol=2e-2, rtol=2e-2), max_err

    print("KERNEL_OK")
</pallas_src>

<mosaic_0001>
module attributes {stable_mosaic.version = 11 : i64} {
  func.func @mlp_kernel(%arg0: i32, %arg1: memref<8x32xf32, #tpu.memory_space<vmem>>, %arg2: memref<32x128xf32, #tpu.memory_space<vmem>>, %arg3: memref<128x128xf32, #tpu.memory_space<vmem>>, %arg4: memref<128x16xf32, #tpu.memory_space<vmem>>, %arg5: memref<8x128xf32, #tpu.memory_space<vmem>>, %arg6: memref<8x16xf32, #tpu.memory_space<vmem>>) attributes {dimension_semantics = [#tpu.dimension_semantics<parallel>], iteration_bounds = array<i64: 1>, scalar_prefetch = 0 : i64, scratch_operands = 0 : i64, tpu.core_type = #tpu.core_type<tc>, window_params = [{transform_indices = @transform_0, window_bounds = array<i64: 8, 32>}, {pipeline_mode = #tpu.pipeline_mode<synchronous>, transform_indices = @transform_1, window_bounds = array<i64: 32, 128>}, {pipeline_mode = #tpu.pipeline_mode<synchronous>, transform_indices = @transform_2, window_bounds = array<i64: 128, 128>}, {pipeline_mode = #tpu.pipeline_mode<synchronous>, transform_indices = @transform_3, window_bounds = array<i64: 128, 16>}, {pipeline_mode = #tpu.pipeline_mode<synchronous>, transform_indices = @transform_4, window_bounds = array<i64: 8, 128>}, {transform_indices = @transform_5, window_bounds = array<i64: 8, 16>}]} {
    %c0 = arith.constant 0 : index
    %c0_0 = arith.constant 0 : index
    %0 = vector.load %arg1[%c0, %c0_0] : memref<8x32xf32, #tpu.memory_space<vmem>>, vector<8x32xf32>
    %c0_1 = arith.constant 0 : index
    %c0_2 = arith.constant 0 : index
    %1 = vector.load %arg2[%c0_1, %c0_2] : memref<32x128xf32, #tpu.memory_space<vmem>>, vector<32x128xf32>
    %cst = arith.constant dense<0.000000e+00> : vector<8x128xf32>
    %2 = tpu.matmul %0, %1, %cst {dimension_numbers = #tpu.dot_dimension_numbers<[1], [0], [0], [1], [0, 0, 1, 1], [], []>} : vector<8x32xf32>, vector<32x128xf32>, vector<8x128xf32> -> vector<8x128xf32>
    %c0_3 = arith.constant 0 : index
    %c0_4 = arith.constant 0 : index
    %3 = vector.load %arg5[%c0_3, %c0_4] : memref<8x128xf32, #tpu.memory_space<vmem>>, vector<1x128xf32>
    %4 = vector.broadcast %3 : vector<1x128xf32> to vector<8x128xf32>
    %5 = arith.addf %2, %4 : vector<8x128xf32>
    %cst_5 = arith.constant 0.000000e+00 : f32
    %6 = vector.broadcast %cst_5 : f32 to vector<8x128xf32>
    %7 = arith.maximumf %5, %6 : vector<8x128xf32>
    %c0_6 = arith.constant 0 : index
    %c0_7 = arith.constant 0 : index
    %8 = vector.load %arg3[%c0_6, %c0_7] : memref<128x128xf32, #tpu.memory_space<vmem>>, vector<128x128xf32>
    %cst_8 = arith.constant dense<0.000000e+00> : vector<8x128xf32>
    %9 = tpu.matmul %7, %8, %cst_8 {dimension_numbers = #tpu.dot_dimension_numbers<[1], [0], [0], [1], [0, 0, 1, 1], [], []>} : vector<8x128xf32>, vector<128x128xf32>, vector<8x128xf32> -> vector<8x128xf32>
    %c1 = arith.constant 1 : index
    %c0_9 = arith.constant 0 : index
    %10 = vector.load %arg5[%c1, %c0_9] : memref<8x128xf32, #tpu.memory_space<vmem>>, vector<1x128xf32>
    %11 = vector.broadcast %10 : vector<1x128xf32> to vector<8x128xf32>
    %12 = arith.addf %9, %11 : vector<8x128xf32>
    %cst_10 = arith.constant 0.000000e+00 : f32
    %13 = vector.broadcast %cst_10 : f32 to vector<8x128xf32>
    %14 = arith.maximumf %12, %13 : vector<8x128xf32>
    %c0_11 = arith.constant 0 : index
    %c0_12 = arith.constant 0 : index
    %15 = vector.load %arg4[%c0_11, %c0_12] : memref<128x16xf32, #tpu.memory_space<vmem>>, vector<128x16xf32>
    %cst_13 = arith.constant dense<0.000000e+00> : vector<8x16xf32>
    %16 = tpu.matmul %14, %15, %cst_13 {dimension_numbers = #tpu.dot_dimension_numbers<[1], [0], [0], [1], [0, 0, 1, 1], [], []>} : vector<8x128xf32>, vector<128x16xf32>, vector<8x16xf32> -> vector<8x16xf32>
    %c2 = arith.constant 2 : index
    %c0_14 = arith.constant 0 : index
    %17 = vector.load %arg5[%c2, %c0_14] : memref<8x128xf32, #tpu.memory_space<vmem>>, vector<1x16xf32>
    %18 = vector.broadcast %17 : vector<1x16xf32> to vector<8x16xf32>
    %19 = arith.addf %16, %18 : vector<8x16xf32>
    %cst_15 = arith.constant 0.000000e+00 : f32
    %20 = vector.broadcast %cst_15 : f32 to vector<8x16xf32>
    %21 = arith.maximumf %19, %20 : vector<8x16xf32>
    %c0_16 = arith.constant 0 : index
    %c0_17 = arith.constant 0 : index
    %22 = vector.load %arg6[%c0_16, %c0_17] : memref<8x16xf32, #tpu.memory_space<vmem>>, vector<8x16xf32>
    tpu.vector_store %arg6[%c0_16, %c0_17], %21 {strides = array<i32>} : memref<8x16xf32, #tpu.memory_space<vmem>>, vector<8x16xf32>,
    return
  }
  func.func @transform_0(%arg0: i32) -> (i32, i32) {
    %c0_i32 = arith.constant 0 : i32
    %c0_i32_0 = arith.constant 0 : i32
    return %arg0, %c0_i32 : i32, i32
  }
  func.func @transform_1(%arg0: i32) -> (i32, i32) {
    %c0_i32 = arith.constant 0 : i32
    %c0_i32_0 = arith.constant 0 : i32
    %c0_i32_1 = arith.constant 0 : i32
    return %c0_i32, %c0_i32_0 : i32, i32
  }
  func.func @transform_2(%arg0: i32) -> (i32, i32) {
    %c0_i32 = arith.constant 0 : i32
    %c0_i32_0 = arith.constant 0 : i32
    %c0_i32_1 = arith.constant 0 : i32
    return %c0_i32, %c0_i32_0 : i32, i32
  }
  func.func @transform_3(%arg0: i32) -> (i32, i32) {
    %c0_i32 = arith.constant 0 : i32
    %c0_i32_0 = arith.constant 0 : i32
    %c0_i32_1 = arith.constant 0 : i32
    return %c0_i32, %c0_i32_0 : i32, i32
  }
  func.func @transform_4(%arg0: i32) -> (i32, i32) {
    %c0_i32 = arith.constant 0 : i32
    %c0_i32_0 = arith.constant 0 : i32
    %c0_i32_1 = arith.constant 0 : i32
    return %c0_i32, %c0_i32_0 : i32, i32
  }
  func.func @transform_5(%arg0: i32) -> (i32, i32) {
    %c0_i32 = arith.constant 0 : i32
    %c0_i32_0 = arith.constant 0 : i32
    return %arg0, %c0_i32 : i32, i32
  }
}

</mosaic_0001>

<llo_original>
// kernel: tpu_custom_call.1
$region0: #{tpu_custom_call.1}
  #allocation0 [shape = 'u32[]', space=smem, size = 0x4, offset = 0x4, fixed_abs, tag = 'smem constant byte address 0x4 - core index']
  #allocation1 [shape = 'u32[72,128]{1,0:T(1,128)}', space=vmem, size = 0x9000, scoped, tag = 'internal scratch']
  %s0 = inlined_call_operand.vmem [shape: f32[8,32], index: 0, kind: input, shape index: {}]
  %s1 = inlined_call_operand.hbm [shape: f32[32,128], index: 1, kind: input, shape index: {}]
  %s2 = inlined_call_operand.vmem [shape: f32[128,128], index: 2, kind: input, shape index: {}]
  %s3 = inlined_call_operand.vmem [shape: f32[128,16], index: 3, kind: input, shape index: {}]
  %s4 = inlined_call_operand.vmem [shape: f32[8,128], index: 4, kind: input, shape index: {}]
  %s5 = inlined_call_operand.hbm [shape: f32[8,16], index: 5, kind: output, shape index: {}]
  %s6 = sld [smem:[#allocation0]]
  $region34: #{tpu_custom_call.1} parent=0
    _
  %s8 = ssub.s32 1, %s6
  %s9 = scalar_select 0, %s8, %s6
  $region1: #{tpu_custom_call.1} parent=0
    #allocation2 [shape = 'u8[16384]{0}', space=vmem, size = 0x4000, scoped, tag = 'input window, operand 1, single buffered']
    #allocation3 [shape = 's32[1]{0}', space=sflag, size = 0x4, scoped, tag = 'scoped memory for tpu_custom_call.1']
    #allocation4 [shape = 's32[1]{0}', space=sflag, size = 0x4, scoped, tag = 'scoped memory for tpu_custom_call.1']
    #allocation5 [shape = 'u8[4096]{0}', space=vmem, size = 0x1000, scoped, tag = 'output window, operand 0, single buffered']
    %10 = vsyncpa [#allocation3], 0
    %11 = vsyncpa [#allocation4], 0
    // Predicated region
    $region2: #{tpu_custom_call.1} parent=1 // pred_check
      _
    $region3: #{tpu_custom_call.1} parent=1 // pred_check_branch
      %13 = sbr.rel (0) target = $region5
    $region4: #{tpu_custom_call.1} parent=1 // pred_region
      _
    $region5: #{tpu_custom_call.1} parent=1 // pred_fallthru
      _
    // Predicated region
    $region6: #{tpu_custom_call.1} parent=1 // pred_check
      _
    $region7: #{tpu_custom_call.1} parent=1 // pred_check_branch
      %15 = sbr.rel (0) target = $region9
    $region8: #{tpu_custom_call.1} parent=1 // pred_region
      %17 = vsyncadd [#allocation3], 0
      %s18 = sshll.u32 %s1, 4
      %s19 = int_to_ptr.hbm [resolvable:$true] %s18
      %s20 = sshll.u32 [#allocation2], 4
      %s21 = int_to_ptr.vmem [resolvable:$true] %s20
      %26 = dma.hbm_to_vmem [thread:$0]  %s19, 512, %s21, [#allocation3], 128, 128, 8
    $region9: #{tpu_custom_call.1} parent=1 // pred_fallthru
      _
    // Predicated region
    $region10: #{tpu_custom_call.1} parent=1 // pred_check
      _
    $region11: #{tpu_custom_call.1} parent=1 // pred_check_branch
      %28 = sbr.rel (0) target = $region13
    $region12: #{tpu_custom_call.1} parent=1 // pred_region
      _
    $region13: #{tpu_custom_call.1} parent=1 // pred_fallthru
      _
    // Predicated region
    $region14: #{tpu_custom_call.1} parent=1 // pred_check
      _
    $region15: #{tpu_custom_call.1} parent=1 // pred_check_branch
      %30 = sbr.rel (0) target = $region17
    $region16: #{tpu_custom_call.1} parent=1 // pred_region
      _
    $region17: #{tpu_custom_call.1} parent=1 // pred_fallthru
      _
    // Predicated region
    $region18: #{tpu_custom_call.1} parent=1 // pred_check
      _
    $region19: #{tpu_custom_call.1} parent=1 // pred_check_branch
      %32 = sbr.rel (0) target = $region21
    $region20: #{tpu_custom_call.1} parent=1 // pred_region
      _
    $region21: #{tpu_custom_call.1} parent=1 // pred_fallthru
      _
    // Predicated region
    $region22: #{tpu_custom_call.1} parent=1 // pred_check
      _
    $region23: #{tpu_custom_call.1} parent=1 // pred_check_branch
      %34 = sbr.rel (0) target = $region25
    $region24: #{tpu_custom_call.1} parent=1 // pred_region
      %36 = dma.done [#allocation3], 512
    $region25: #{tpu_custom_call.1} parent=1 // pred_fallthru
      _
    %v37 = vld [vmem:[%s0] sm:$0xff]
    %v38 = vld [vmem:[#allocation2] sm:$0xff]
    %v39 = vld [vmem:[#allocation2 + $0x8] sm:$0xff]
    %v40 = vld [vmem:[#allocation2 + $0x10] sm:$0xff]
    %v41 = vld [vmem:[#allocation2 + $0x18] sm:$0xff]
    %v42 = vld [vmem:[%s4] sm:$0x1]
    %v43 = vperm.slane %v42, 0
    %vm44 = vcmask 261120
    %v46 = vsel %vm44, %v37, 0
    %48 = vmatpush.msra.mxu0 0.0
    %49 = vmatpush.msra.mxu0 0.0
    %50 = vmatpush.msra.mxu0 0.0
    %51 = vmatpush.msra.mxu0 0.0
    %52 = vmatpush.msra.mxu0 0.0
    %53 = vmatpush.msra.mxu0 0.0
    %54 = vmatpush.msra.mxu0 0.0
    %55 = vmatpush.msra.mxu0 0.0
    %56 = vmatpush.msra.mxu0 0.0
    %57 = vmatpush.msra.mxu0 0.0
    %58 = vmatpush.msra.mxu0 0.0
    %59 = vmatpush.msra.mxu0 0.0
    %60 = vmatpush.msra.mxu0 %v41
    %61 = vmatpush.msra.mxu0 %v40
    %62 = vmatpush.msra.mxu0 %v39
    %63 = vmatpush.msra.mxu0 %v38
    %64 = vmatmul.f32.gmra.mxu0 %v46
    %v65 = vpop.f32.mrf.mxu0
    %v66 = vadd.f32 %v43, %v65
    %67 = vdwg.mxu0
    %v68 = vmax.f32 %v66, 0.0
    %v69 = vld [vmem:[%s2] sm:$0xff]
    %v70 = vld [vmem:[%s2 + $0x8] sm:$0xff]
    %v71 = vld [vmem:[%s2 + $0x10] sm:$0xff]
    %v72 = vld [vmem:[%s2 + $0x18] sm:$0xff]
    %v73 = vld [vmem:[%s2 + $0x20] sm:$0xff]
    %v74 = vld [vmem:[%s2 + $0x28] sm:$0xff]
    %v75 = vld [vmem:[%s2 + $0x30] sm:$0xff]
    %v76 = vld [vmem:[%s2 + $0x38] sm:$0xff]
    %v77 = vld [vmem:[%s2 + $0x40] sm:$0xff]
    %v78 = vld [vmem:[%s2 + $0x48] sm:$0xff]
    %v79 = vld [vmem:[%s2 + $0x50] sm:$0xff]
    %v80 = vld [vmem:[%s2 + $0x58] sm:$0xff]
    %v81 = vld [vmem:[%s2 + $0x60] sm:$0xff]
    %v82 = vld [vmem:[%s2 + $0x68] sm:$0xff]
    %v83 = vld [vmem:[%s2 + $0x70] sm:$0xff]
    %v84 = vld [vmem:[%s2 + $0x78] sm:$0xff]
    %v85 = vld [vmem:[%s4 + $0x1] sm:$0x1]
    %v86 = vperm.slane %v85, 0
    %87 = vmatpush.msra.mxu0 %v84
    %88 = vmatpush.msra.mxu0 %v83
    %89 = vmatpush.msra.mxu0 %v82
    %90 = vmatpush.msra.mxu0 %v81
    %91 = vmatpush.msra.mxu0 %v80
    %92 = vmatpush.msra.mxu0 %v79
    %93 = vmatpush.msra.mxu0 %v78
    %94 = vmatpush.msra.mxu0 %v77
    %95 = vmatpush.msra.mxu0 %v76
    %96 = vmatpush.msra.mxu0 %v75
    %97 = vmatpush.msra.mxu0 %v74
    %98 = vmatpush.msra.mxu0 %v73
    %99 = vmatpush.msra.mxu0 %v72
    %100 = vmatpush.msra.mxu0 %v71
    %101 = vmatpush.msra.mxu0 %v70
    %102 = vmatpush.msra.mxu0 %v69
    %103 = vmatmul.f32.gmra.mxu0 %v68
    %v104 = vpop.f32.mrf.mxu0
    %v105 = vadd.f32 %v86, %v104
    %106 = vdwg.mxu0
    %v107 = vmax.f32 %v105, 0.0
    %v108 = vld [vmem:[%s3] sm:$0xff]
    %v109 = vld [vmem:[%s3 + $0x8] sm:$0xff]
    %v110 = vld [vmem:[%s3 + $0x10] sm:$0xff]
    %v111 = vld [vmem:[%s3 + $0x18] sm:$0xff]
    %v112 = vld [vmem:[%s3 + $0x20] sm:$0xff]
    %v113 = vld [vmem:[%s3 + $0x28] sm:$0xff]
    %v114 = vld [vmem:[%s3 + $0x30] sm:$0xff]
    %v115 = vld [vmem:[%s3 + $0x38] sm:$0xff]
    %v116 = vld [vmem:[%s3 + $0x40] sm:$0xff]
    %v117 = vld [vmem:[%s3 + $0x48] sm:$0xff]
    %v118 = vld [vmem:[%s3 + $0x50] sm:$0xff]
    %v119 = vld [vmem:[%s3 + $0x58] sm:$0xff]
    %v120 = vld [vmem:[%s3 + $0x60] sm:$0xff]
    %v121 = vld [vmem:[%s3 + $0x68] sm:$0xff]
    %v122 = vld [vmem:[%s3 + $0x70] sm:$0xff]
    %v123 = vld [vmem:[%s3 + $0x78] sm:$0xff]
    %v124 = vld [vmem:[%s4 + $0x2] sm:$0x1]
    %v125 = vperm.slane %v124, 0
    %126 = vmatpush.msra.mxu0 %v123
    %127 = vmatpush.msra.mxu0 %v122
    %128 = vmatpush.msra.mxu0 %v121
    %129 = vmatpush.msra.mxu0 %v120
    %130 = vmatpush.msra.mxu0 %v119
    %131 = vmatpush.msra.mxu0 %v118
    %132 = vmatpush.msra.mxu0 %v117
    %133 = vmatpush.msra.mxu0 %v116
    %134 = vmatpush.msra.mxu0 %v115
    %135 = vmatpush.msra.mxu0 %v114
    %136 = vmatpush.msra.mxu0 %v113
    %137 = vmatpush.msra.mxu0 %v112
    %138 = vmatpush.msra.mxu0 %v111
    %139 = vmatpush.msra.mxu0 %v110
    %140 = vmatpush.msra.mxu0 %v109
    %141 = vmatpush.msra.mxu0 %v108
    %142 = vmatmul.f32.gmra.mxu0 %v107
    %v143 = vpop.f32.mrf.mxu0
    %v144 = vadd.f32 %v125, %v143
    %145 = vdwg.mxu0
    %v146 = vmax.f32 %v144, 0.0
    %vm147 = vcmask 130048
    %148 = vst.msk [vmem:[#allocation5] sm:$0xff] %vm147, %v146
    // Predicated region
    $region26: #{tpu_custom_call.1} parent=1 // pred_check
      _
    $region27: #{tpu_custom_call.1} parent=1 // pred_check_branch
      %150 = sbr.rel (0) target = $region29
    $region28: #{tpu_custom_call.1} parent=1 // pred_region
      %152 = vsyncadd [#allocation4], 0
      %s154 = sshll.u32 [#allocation5], 4
      %s155 = int_to_ptr.vmem [resolvable:$true] %s154
      %s156 = sshll.u32 %s5, 4
      %s157 = int_to_ptr.hbm [resolvable:$true] %s156
      %159 = dma.vmem_to_hbm [thread:$0]  %s155, 128, %s157, [#allocation4]
    $region29: #{tpu_custom_call.1} parent=1 // pred_fallthru
      _
    // Predicated region
    $region30: #{tpu_custom_call.1} parent=1 // pred_check
      _
    $region31: #{tpu_custom_call.1} parent=1 // pred_check_branch
      %161 = sbr.rel (0) target = $region33
    $region32: #{tpu_custom_call.1} parent=1 // pred_region
      %163 = dma.done [#allocation4], 128
    $region33: #{tpu_custom_call.1} parent=1 // pred_fallthru
      _
    %164 = vsyncpa [#allocation3], 1
    %165 = vsyncpa [#allocation4], 1

</llo_original>
